<compile_context>
chip_gen: v5e
topology: v5e:2x2
jax: 0.10.0
libtpu: 0.0.40
codegen_flags: <defaults>
</compile_context>

<pallas_src>
import jax
import jax.numpy as jnp
from jax.experimental import pallas as pl
from jax.experimental.pallas import tpu as pltpu


_LANE = 128
_SUBLANE = 8
_VREG_FILE_BYTES = 64 * 4 * 1024  # 64 vregs x 4 KiB (same on v5e / v6e / v7x)


def _round_up(n, m):
    return -(-n // m) * m


def _make_mlp_kernel(layer_dims, row_offsets, act_dtype):
    """layer_dims: tuple of (out_i, in_i) per linear layer.
    row_offsets: static row start of each layer's [W | b] block in the param slab.
    act_dtype:   dtype of inter-layer activations (bf16 keeps the MXU on its native path)."""
    n_layers = len(layer_dims)

    def kernel(x_ref, p_ref, o_ref):
        h = x_ref[...]                                    # (in_dim, tile_b); batch on lanes
        for li, (out_i, in_i) in enumerate(layer_dims):
            r0 = row_offsets[li]
            w = p_ref[r0:r0 + out_i, 0:in_i]              # (out_i, in_i)  PyTorch W layout
            b = p_ref[r0:r0 + out_i, in_i:in_i + 1]       # (out_i, 1)     lane-broadcast bias
            acc = jnp.dot(w, h, preferred_element_type=jnp.float32)   # f32 accumulation
            acc = acc + b.astype(jnp.float32)             # bias on the f32 accumulator
            if li < n_layers - 1:                         # ReLU on all but the last layer
                acc = jnp.maximum(acc, 0.0)
                h = acc.astype(act_dtype)                 # narrow only between layers
            else:
                h = acc
        # TODO(synk): training-mode Dropout(p>0), BatchNorm1d and output_activation are
        #             not modeled; in this configuration they are identity / absent.
        o_ref[...] = h.astype(o_ref.dtype)                # single down-cast at the store

    return kernel


def pack_params(weights, biases, dtype=jnp.bfloat16):
    """Pack all [W_i | b_i] into one 2-D slab (single DMA, resident across batch tiles).

    weights[i]: (out_i, in_i) PyTorch nn.Linear layout; biases[i]: (out_i,).
    Per-layer blocks start at sublane-aligned (multiple-of-8) row offsets; the slab width
    is the max per-layer round_up(in_i + 1, 128).  (For this net every layer needs exactly
    one 128-lane column group; for strongly heterogeneous widths, split wide/narrow layers
    into separate slabs to reclaim VMEM on v7x.)
    """
    n_cols = max(_round_up(w.shape[1] + 1, _LANE) for w in weights)
    blocks, row_offsets, row = [], [], 0
    for w, b in zip(weights, biases):
        out_i, in_i = w.shape
        rows_p = _round_up(out_i, _SUBLANE)
        blk = jnp.zeros((rows_p, n_cols), dtype=jnp.float32)
        blk = blk.at[:out_i, :in_i].set(w)
        blk = blk.at[:out_i, in_i].set(b)
        blocks.append(blk)
        row_offsets.append(row)
        row += rows_p
    slab = jnp.concatenate(blocks, axis=0).astype(dtype)
    return slab, tuple(row_offsets)


def _choose_tile_b(batch_padded, tile_b_req, widest_dim):
    """Pick the batch tile width (multiple of 128 lanes).

    (a) vreg-pressure cap: keep ~2 live (widest_dim, tile_b) f32 activations inside the
        64 x 4 KiB vector register file so the layer loop stays spill-free (v5e has only
        one vst slot per bundle, so spills hurt it most).  hidden=32 -> cap = 1024.
    (b) v7x megacore: with dimension_semantics=("parallel",) the batch grid axis is
        sharded across 2 TensorCores, so prefer >= 2 batch tiles instead of one big tile.
    """
    cap = _VREG_FILE_BYTES // (2 * widest_dim * 4)
    cap = max(_LANE, (cap // _LANE) * _LANE)
    tb = min(tile_b_req, cap, batch_padded)
    tb = max(_LANE, (tb // _LANE) * _LANE)
    if batch_padded >= 2 * _LANE and batch_padded // tb < 2:
        tb = max(_LANE, ((batch_padded // 2) // _LANE) * _LANE)
    return tb


def single_period_net_forward(x, weights, biases, *, tile_b=1024, io_dtype=jnp.bfloat16):
    """Pallas forward of singlePeriodNet (ReLU, no batchnorm, dropout=0).

    x:        (in_dim, batch) -- module-facing layout (forward does x.T internally)
    weights:  list of (out_i, in_i) arrays (PyTorch nn.Linear layout)
    biases:   list of (out_i,) arrays
    tile_b:   batch tile width; the primary perf knob -- sweep 512 / 1024 / 2048 for
              large Monte-Carlo batches (auto-capped by vreg pressure and batch size).
    io_dtype: dtype of x / output / parameter slab in HBM (bf16 halves HBM traffic and
              VMEM tiles; all accumulation stays f32).  Use jnp.float32 for exactness.
    returns:  (out_dim, batch) array in io_dtype.
    """
    in_dim, batch = x.shape
    out_dim = weights[-1].shape[0]
    layer_dims = tuple((w.shape[0], w.shape[1]) for w in weights)
    widest = max([in_dim] + [o for o, _ in layer_dims])

    params, row_offsets = pack_params(weights, biases, dtype=io_dtype)
    pr, pc = params.shape
    itemsize = jnp.dtype(io_dtype).itemsize

    # Pad batch to a multiple of 128 lanes, pick the tile, then re-pad to a multiple of
    # tile_b so every tile (in particular every output store) is full and lane-dense.
    batch_p = _round_up(batch, _LANE)
    tile_b = _choose_tile_b(batch_p, tile_b, widest)
    batch_p = _round_up(batch_p, tile_b)
    grid = (batch_p // tile_b,)

    x_p = x.astype(io_dtype)
    if batch_p != batch:
        x_p = jnp.pad(x_p, ((0, 0), (0, batch_p - batch)))

    flops = 2 * batch_p * sum(o * i for o, i in layer_dims)
    bytes_accessed = (in_dim * batch_p + out_dim * batch_p + pr * pc) * itemsize

    grid_spec = pltpu.PrefetchScalarGridSpec(
        num_scalar_prefetch=0,
        grid=grid,
        in_specs=[
            # activations: batch tiled over the grid, batch dim on the lane axis
            pl.BlockSpec((in_dim, tile_b), lambda i: (0, i)),
            # parameter slab: constant block -> one DMA, VMEM-resident; single-buffered
            # because double-buffering a never-changing block only burns VMEM (v7x: 64 MiB).
            pl.BlockSpec((pr, pc), lambda i: (0, 0),
                         pipeline_mode=pl.Buffered(buffer_count=1)),
        ],
        out_specs=pl.BlockSpec((out_dim, tile_b), lambda i: (0, i)),
    )

    out_p = pl.pallas_call(
        _make_mlp_kernel(layer_dims, row_offsets, io_dtype),
        grid_spec=grid_spec,
        out_shape=jax.ShapeDtypeStruct((out_dim, batch_p), io_dtype),
        compiler_params=pltpu.CompilerParams(
            dimension_semantics=("parallel",)),      # batch tiles shard across v7x's 2 TCs
        cost_estimate=pl.CostEstimate(
            flops=flops, transcendentals=0, bytes_accessed=bytes_accessed),
    )(x_p, params)

    return out_p[:, :batch] if batch_p != batch else out_p


def init_params(key, sizes, gain=1.5):
    """Xavier-normal (gain=1.5) weights like the PyTorch module; default Linear bias init."""
    weights, biases = [], []
    for fan_in, fan_out in zip(sizes[:-1], sizes[1:]):
        key, kw, kb = jax.random.split(key, 3)
        std = gain * jnp.sqrt(2.0 / (fan_in + fan_out))
        w = std * jax.random.normal(kw, (fan_out, fan_in), dtype=jnp.float32)
        bound = 1.0 / jnp.sqrt(fan_in)
        b = jax.random.uniform(kb, (fan_out,), dtype=jnp.float32,
                               minval=-bound, maxval=bound)
        weights.append(w)
        biases.append(b)
    return weights, biases


def reference_forward(x, weights, biases, mimic_dtype=None):
    """Pure-JAX reference mirroring singlePeriodNet.forward (ReLU, no bn, p=0).

    With mimic_dtype set, x / params / inter-layer activations are rounded to that dtype
    (sums still in f32), mirroring the kernel's bf16-I/O + f32-accumulation path."""
    def q(a):
        return a.astype(mimic_dtype).astype(jnp.float32) if mimic_dtype is not None else a
    h = jnp.transpose(q(x))                               # x.T: (batch, in_dim)
    n = len(weights)
    for i, (w, b) in enumerate(zip(weights, biases)):
        h = h @ q(w).T + q(b)
        if i < n - 1:
            h = q(jnp.maximum(h, 0.0))
    return jnp.transpose(h)                               # (out_dim, batch)


if __name__ == "__main__":
    sizes = [8, 32, 32, 32, 8]      # [in, hidden, hidden, hidden, out]
    batch = 256                     # padded-batch 256 -> two 128-wide tiles -> grid=(2,)

    key = jax.random.PRNGKey(0)
    key, kx = jax.random.split(key)
    # PyTorch-facing input layout: (sizes[0], batch)
    x = jax.random.normal(kx, (sizes[0], batch), dtype=jnp.float32)
    weights, biases = init_params(key, sizes)

    # 1) f32 I/O path: tight check against the pure-JAX module reference.
    out_f32 = jax.block_until_ready(
        single_period_net_forward(x, weights, biases, io_dtype=jnp.float32))
    ref_f32 = reference_forward(x, weights, biases)
    assert out_f32.shape == (sizes[-1], batch)
    assert jnp.allclose(out_f32, ref_f32, rtol=1e-4, atol=1e-4), "f32 mismatch vs reference"

    # 2) default performance path: bf16 I/O + f32 accumulation.
    out_bf16 = jax.block_until_ready(single_period_net_forward(x, weights, biases))
    ref_bf16 = reference_forward(x, weights, biases, mimic_dtype=jnp.bfloat16)
    assert out_bf16.shape == (sizes[-1], batch) and out_bf16.dtype == jnp.bfloat16
    assert jnp.allclose(out_bf16.astype(jnp.float32), ref_bf16,
                        rtol=2e-2, atol=2e-2), "bf16 mismatch vs reference"

    # 3) non-multiple-of-128 batch exercises the wrapper pad + slice path (masking-free tiles).
    xb = x[:, :96]
    out_small = jax.block_until_ready(
        single_period_net_forward(xb, weights, biases, io_dtype=jnp.float32))
    assert out_small.shape == (sizes[-1], 96)
    assert jnp.allclose(out_small, reference_forward(xb, weights, biases),
                        rtol=1e-4, atol=1e-4), "padded-batch mismatch vs reference"

    print("KERNEL_OK")
</pallas_src>

<mosaic_0001>
module attributes {stable_mosaic.version = 11 : i64} {
  func.func @kernel(%arg0: i32, %arg1: memref<8x128xf32, #tpu.memory_space<vmem>>, %arg2: memref<104x128xf32, #tpu.memory_space<vmem>>, %arg3: memref<8x128xf32, #tpu.memory_space<vmem>>) attributes {dimension_semantics = [#tpu.dimension_semantics<parallel>], iteration_bounds = array<i64: 2>, scalar_prefetch = 0 : i64, scratch_operands = 0 : i64, tpu.core_type = #tpu.core_type<tc>, window_params = [{transform_indices = @transform_0, window_bounds = array<i64: 8, 128>}, {pipeline_mode = #tpu.pipeline_mode<synchronous>, transform_indices = @transform_1, window_bounds = array<i64: 104, 128>}, {transform_indices = @transform_2, window_bounds = array<i64: 8, 128>}]} {
    %c0 = arith.constant 0 : index
    %c0_0 = arith.constant 0 : index
    %0 = vector.load %arg1[%c0, %c0_0] : memref<8x128xf32, #tpu.memory_space<vmem>>, vector<8x128xf32>
    %c0_1 = arith.constant 0 : index
    %c0_2 = arith.constant 0 : index
    %1 = vector.load %arg2[%c0_1, %c0_2] : memref<104x128xf32, #tpu.memory_space<vmem>>, vector<32x8xf32>
    %c0_3 = arith.constant 0 : index
    %c8 = arith.constant 8 : index
    %2 = vector.load %arg2[%c0_3, %c8] : memref<104x128xf32, #tpu.memory_space<vmem>>, vector<32x1xf32>
    %cst = arith.constant dense<0.000000e+00> : vector<32x128xf32>
    %3 = tpu.matmul %1, %0, %cst {dimension_numbers = #tpu.dot_dimension_numbers<[1], [0], [0], [1], [0, 0, 1, 1], [], []>} : vector<32x8xf32>, vector<8x128xf32>, vector<32x128xf32> -> vector<32x128xf32>
    %4 = vector.broadcast %2 : vector<32x1xf32> to vector<32x128xf32>
    %5 = arith.addf %3, %4 : vector<32x128xf32>
    %cst_4 = arith.constant 0.000000e+00 : f32
    %6 = vector.broadcast %cst_4 : f32 to vector<32x128xf32>
    %7 = arith.maximumf %5, %6 : vector<32x128xf32>
    %c32 = arith.constant 32 : index
    %c0_5 = arith.constant 0 : index
    %8 = vector.load %arg2[%c32, %c0_5] : memref<104x128xf32, #tpu.memory_space<vmem>>, vector<32x32xf32>
    %c32_6 = arith.constant 32 : index
    %c32_7 = arith.constant 32 : index
    %9 = vector.load %arg2[%c32_6, %c32_7] : memref<104x128xf32, #tpu.memory_space<vmem>>, vector<32x1xf32>
    %cst_8 = arith.constant dense<0.000000e+00> : vector<32x128xf32>
    %10 = tpu.matmul %8, %7, %cst_8 {dimension_numbers = #tpu.dot_dimension_numbers<[1], [0], [0], [1], [0, 0, 1, 1], [], []>} : vector<32x32xf32>, vector<32x128xf32>, vector<32x128xf32> -> vector<32x128xf32>
    %11 = vector.broadcast %9 : vector<32x1xf32> to vector<32x128xf32>
    %12 = arith.addf %10, %11 : vector<32x128xf32>
    %cst_9 = arith.constant 0.000000e+00 : f32
    %13 = vector.broadcast %cst_9 : f32 to vector<32x128xf32>
    %14 = arith.maximumf %12, %13 : vector<32x128xf32>
    %c64 = arith.constant 64 : index
    %c0_10 = arith.constant 0 : index
    %15 = vector.load %arg2[%c64, %c0_10] : memref<104x128xf32, #tpu.memory_space<vmem>>, vector<32x32xf32>
    %c64_11 = arith.constant 64 : index
    %c32_12 = arith.constant 32 : index
    %16 = vector.load %arg2[%c64_11, %c32_12] : memref<104x128xf32, #tpu.memory_space<vmem>>, vector<32x1xf32>
    %cst_13 = arith.constant dense<0.000000e+00> : vector<32x128xf32>
    %17 = tpu.matmul %15, %14, %cst_13 {dimension_numbers = #tpu.dot_dimension_numbers<[1], [0], [0], [1], [0, 0, 1, 1], [], []>} : vector<32x32xf32>, vector<32x128xf32>, vector<32x128xf32> -> vector<32x128xf32>
    %18 = vector.broadcast %16 : vector<32x1xf32> to vector<32x128xf32>
    %19 = arith.addf %17, %18 : vector<32x128xf32>
    %cst_14 = arith.constant 0.000000e+00 : f32
    %20 = vector.broadcast %cst_14 : f32 to vector<32x128xf32>
    %21 = arith.maximumf %19, %20 : vector<32x128xf32>
    %c96 = arith.constant 96 : index
    %c0_15 = arith.constant 0 : index
    %22 = vector.load %arg2[%c96, %c0_15] : memref<104x128xf32, #tpu.memory_space<vmem>>, vector<8x32xf32>
    %c96_16 = arith.constant 96 : index
    %c32_17 = arith.constant 32 : index
    %23 = vector.load %arg2[%c96_16, %c32_17] : memref<104x128xf32, #tpu.memory_space<vmem>>, vector<8x1xf32>
    %cst_18 = arith.constant dense<0.000000e+00> : vector<8x128xf32>
    %24 = tpu.matmul %22, %21, %cst_18 {dimension_numbers = #tpu.dot_dimension_numbers<[1], [0], [0], [1], [0, 0, 1, 1], [], []>} : vector<8x32xf32>, vector<32x128xf32>, vector<8x128xf32> -> vector<8x128xf32>
    %25 = vector.broadcast %23 : vector<8x1xf32> to vector<8x128xf32>
    %26 = arith.addf %24, %25 : vector<8x128xf32>
    %c0_19 = arith.constant 0 : index
    %c0_20 = arith.constant 0 : index
    %27 = vector.load %arg3[%c0_19, %c0_20] : memref<8x128xf32, #tpu.memory_space<vmem>>, vector<8x128xf32>
    tpu.vector_store %arg3[%c0_19, %c0_20], %26 {strides = array<i32>} : memref<8x128xf32, #tpu.memory_space<vmem>>, vector<8x128xf32>,
    return
  }
  func.func @transform_0(%arg0: i32) -> (i32, i32) {
    %c0_i32 = arith.constant 0 : i32
    %c0_i32_0 = arith.constant 0 : i32
    return %c0_i32, %arg0 : i32, i32
  }
  func.func @transform_1(%arg0: i32) -> (i32, i32) {
    %c0_i32 = arith.constant 0 : i32
    %c0_i32_0 = arith.constant 0 : i32
    %c0_i32_1 = arith.constant 0 : i32
    return %c0_i32, %c0_i32_0 : i32, i32
  }
  func.func @transform_2(%arg0: i32) -> (i32, i32) {
    %c0_i32 = arith.constant 0 : i32
    %c0_i32_0 = arith.constant 0 : i32
    return %c0_i32, %arg0 : i32, i32
  }
}

</mosaic_0001>

<llo_original>
// kernel: tpu_custom_call.1
$region0: #{tpu_custom_call.1}
  #allocation0 [shape = 'u32[]', space=smem, size = 0x4, offset = 0x4, fixed_abs, tag = 'smem constant byte address 0x4 - core index']
  #allocation1 [shape = 'u32[72,128]{1,0:T(1,128)}', space=vmem, size = 0x9000, scoped, tag = 'internal scratch']
  %s0 = inlined_call_operand.hbm [shape: f32[8,256], index: 0, kind: input, shape index: {}]
  %s1 = inlined_call_operand.hbm [shape: f32[104,128], index: 1, kind: input, shape index: {}]
  %s2 = inlined_call_operand.hbm [shape: f32[8,256], index: 2, kind: output, shape index: {}]
  %s3 = sld [smem:[#allocation0]]
  $region49: #{tpu_custom_call.1} parent=0
    _
  %s5 = ssub.s32 1, %s3
  %s6 = scalar_select 0, %s5, %s3
  $region1: #{tpu_custom_call.1} parent=0
    #allocation2 [shape = 'u8[8192]{0}', space=vmem, size = 0x2000, scoped, tag = 'input window, operand 0']
    #allocation3 [shape = 's32[2]{0}', space=sflag, size = 0x8, scoped, tag = 'scoped memory for tpu_custom_call.1']
    #allocation4 [shape = 's32[2]{0}', space=sflag, size = 0x8, scoped, tag = 'scoped memory for tpu_custom_call.1']
    #allocation5 [shape = 'u8[53248]{0}', space=vmem, size = 0xd000, scoped, tag = 'input window, operand 1, single buffered']
    #allocation6 [shape = 's32[1]{0}', space=sflag, size = 0x4, scoped, tag = 'scoped memory for tpu_custom_call.1']
    #allocation7 [shape = 'u8[8192]{0}', space=vmem, size = 0x2000, scoped, tag = 'output window, operand 0']
    %7 = vsyncpa [#allocation3], 0
    %s8 = scalar_lea.sflag [#allocation3], 1
    %9 = vsyncpa %s8, 0
    %10 = vsyncpa [#allocation6], 0
    %11 = vsyncpa [#allocation4], 0
    %s12 = scalar_lea.sflag [#allocation4], 1
    %13 = vsyncpa %s12, 0
    loop: start=0, step=1, limit=4
    $region2: #{tpu_custom_call.1} parent=1 // loop_pre_header
      _
    $region3: #{tpu_custom_call.1} parent=1 // loop_header
      %s15 = sphi 0, %s19
      %p16 = scmp.ge.s32.totalorder %s15, 4
      %s25 = sphi 0, %s27
      %s28 = sphi 0, %s25
      %s29 = sphi 0, %s28
      %s45 = sphi 0, %s29
      %s49 = sphi 0, %s49
      %s51 = sphi 0, %s49
      %s52 = sphi 0, %s51
      %s66 = sphi 0, %s52
      %s72 = sphi 0, %s74
      %s75 = sphi 0, %s72
      %s76 = sphi 0, %s75
      %s92 = sphi 0, %s76
    $region4: #{tpu_custom_call.1} parent=1 // loop_header_branch
      %18 = sbr.rel (%p16) target = $region8
    $region5: #{tpu_custom_call.1} parent=1 // loop_body
      %s20 = ssub.s32 %s15, 1
      %s21 = ssub.s32 %s15, 2
      %s22 = sadd.s32 %s15, 1
      %s23 = ssub.s32 %s15, %s22
      %p24 = scmp.eq.s32.totalorder %s23, 0
      %s26 = sadd.s32 %s25, 1
      %s27 = scalar_select %p24, %s25, %s26
      %p30 = pneg %p24
      %p31 = scmp.eq.s32.totalorder %s15, 1
      %p32 = por %p30, %p31
      %p33 = scmp.ne.s32.totalorder %s25, %s28
      %p34 = scmp.eq.s32.totalorder %s15, 0
      %p35 = por %p33, %p34
      %p36 = scmp.ne.s32.totalorder %s25, %s28
      %p37 = scmp.eq.s32.totalorder %s20, 1
      %p38 = por %p36, %p37
      %p39 = scmp.ne.s32.totalorder %s28, %s29
      %p40 = scmp.eq.s32.totalorder %s20, 0
      %p41 = por %p39, %p40
      %p42 = scmp.ne.s32.totalorder %s28, %s29
      %p43 = scmp.eq.s32.totalorder %s21, 1
      %p44 = por %p42, %p43
      %p46 = scmp.ne.s32.totalorder %s29, %s45
      %p47 = scmp.eq.s32.totalorder %s21, 0
      %p48 = por %p46, %p47
      %s50 = sadd.s32 %s49, 1
      %p53 = scmp.eq.s32.totalorder %s15, 1
      %p54 = scmp.ne.s32.totalorder %s49, %s51
      %p55 = scmp.eq.s32.totalorder %s15, 0
      %p56 = por %p54, %p55
      %p57 = scmp.ne.s32.totalorder %s49, %s51
      %p58 = scmp.eq.s32.totalorder %s20, 1
      %p59 = por %p57, %p58
      %p60 = scmp.ne.s32.totalorder %s51, %s52
      %p61 = scmp.eq.s32.totalorder %s20, 0
      %p62 = por %p60, %p61
      %p63 = scmp.ne.s32.totalorder %s51, %s52
      %p64 = scmp.eq.s32.totalorder %s21, 1
      %p65 = por %p63, %p64
      %p67 = scmp.ne.s32.totalorder %s52, %s66
      %p68 = scmp.eq.s32.totalorder %s21, 0
      %p69 = por %p67, %p68
      %s70 = ssub.s32 %s15, %s22
      %p71 = scmp.eq.s32.totalorder %s70, 0
      %s73 = sadd.s32 %s72, 1
      %s74 = scalar_select %p71, %s72, %s73
      %p77 = pneg %p71
      %p78 = scmp.eq.s32.totalorder %s15, 1
      %p79 = por %p77, %p78
      %p80 = scmp.ne.s32.totalorder %s72, %s75
      %p81 = scmp.eq.s32.totalorder %s15, 0
      %p82 = por %p80, %p81
      %p83 = scmp.ne.s32.totalorder %s72, %s75
      %p84 = scmp.eq.s32.totalorder %s20, 1
      %p85 = por %p83, %p84
      %p86 = scmp.ne.s32.totalorder %s75, %s76
      %p87 = scmp.eq.s32.totalorder %s20, 0
      %p88 = por %p86, %p87
      %p89 = scmp.ne.s32.totalorder %s75, %s76
      %p90 = scmp.eq.s32.totalorder %s21, 1
      %p91 = por %p89, %p90
      %p93 = scmp.ne.s32.totalorder %s76, %s92
      %p94 = scmp.eq.s32.totalorder %s21, 0
      %p95 = por %p93, %p94
      %p96 = scmp.le.s32.totalorder 1, %s15
      %p97 = scmp.lt.s32.totalorder %s15, 3
      %p98 = pnand %p96, %p97
      %p99 = pneg %p98
      // Predicated region
      $region9: #{tpu_custom_call.1} parent=5 // pred_check
        _
      $region10: #{tpu_custom_call.1} parent=5 // pred_check_branch
        %101 = sbr.rel (%p98) target = $region12
      $region11: #{tpu_custom_call.1} parent=5 // pred_region
        %s102 = ssub.s32 %s15, 1
        // Predicated region
        $region13: #{tpu_custom_call.1} parent=11 // pred_check
          %p103 = pneg %p62
        $region14: #{tpu_custom_call.1} parent=11 // pred_check_branch
          %105 = sbr.rel (%p103) target = $region16
        $region15: #{tpu_custom_call.1} parent=11 // pred_region
          %107 = vsyncadd [#allocation6], 0
          %s108 = sshll.u32 %s1, 4
          %s109 = int_to_ptr.hbm [resolvable:$true] %s108
          %s110 = sshll.u32 [#allocation5], 4
          %s111 = int_to_ptr.vmem [resolvable:$true] %s110
          %116 = dma.hbm_to_vmem [thread:$0]  %s109, 1664, %s111, [#allocation6], 128, 128, 8
        $region16: #{tpu_custom_call.1} parent=11 // pred_fallthru
          _
      $region12: #{tpu_custom_call.1} parent=5 // pred_fallthru
        _
      %p117 = scmp.lt.s32.totalorder %s15, 2
      // Predicated region
      $region17: #{tpu_custom_call.1} parent=5 // pred_check
        %p118 = pneg %p117
      $region18: #{tpu_custom_call.1} parent=5 // pred_check_branch
        %120 = sbr.rel (%p118) target = $region20
      $region19: #{tpu_custom_call.1} parent=5 // pred_region
        // Predicated region
        $region21: #{tpu_custom_call.1} parent=19 // pred_check
          %p121 = pneg %p35
        $region22: #{tpu_custom_call.1} parent=19 // pred_check_branch
          %123 = sbr.rel (%p121) target = $region24
        $region23: #{tpu_custom_call.1} parent=19 // pred_region
          %s124 = sand.u32 %s25, 1
          %s125 = scalar_lea.sflag [#allocation3], %s124
          %s126 = sand.u32 %s25, 1
          %s127 = smul.addr %s126, 8
          %s128 = scalar_lea.vmem [#allocation2], %s127
          %130 = vsyncadd %s125, 0
          %s131 = smul.addr %s15, 8
          %s132 = scalar_lea.hbm %s0, %s131
          %s134 = sshll.u32 %s132, 4
          %s135 = int_to_ptr.hbm [resolvable:$true] %s134
          %s136 = sshll.u32 %s128, 4
          %s137 = int_to_ptr.vmem [resolvable:$true] %s136
          %139 = dma.hbm_to_vmem [thread:$0]  %s135, 128, %s137, %s125
        $region24: #{tpu_custom_call.1} parent=19 // pred_fallthru
          _
      $region20: #{tpu_custom_call.1} parent=5 // pred_fallthru
        _
      %p140 = scmp.le.s32.totalorder 1, %s15
      %p141 = scmp.lt.s32.totalorder %s15, 3
      %p142 = pnand %p140, %p141
      %p143 = pneg %p142
      // Predicated region
      $region25: #{tpu_custom_call.1} parent=5 // pred_check
        _
      $region26: #{tpu_custom_call.1} parent=5 // pred_check_branch
        %145 = sbr.rel (%p142) target = $region28
      $region27: #{tpu_custom_call.1} parent=5 // pred_region
        %s146 = ssub.s32 %s15, 1
        %s147 = sand.u32 %s28, 1
        %s148 = scalar_lea.sflag [#allocation3], %s147
        %s149 = sand.u32 %s28, 1
        %s150 = smul.addr %s149, 8
        %s151 = scalar_lea.vmem [#allocation2], %s150
        // Predicated region
        $region29: #{tpu_custom_call.1} parent=27 // pred_check
          %p152 = pneg %p41
        $region30: #{tpu_custom_call.1} parent=27 // pred_check_branch
          %154 = sbr.rel (%p152) target = $region32
        $region31: #{tpu_custom_call.1} parent=27 // pred_region
          %156 = dma.done %s148, 128
        $region32: #{tpu_custom_call.1} parent=27 // pred_fallthru
          _
        // Predicated region
        $region33: #{tpu_custom_call.1} parent=27 // pred_check
          %p157 = pneg %p62
        $region34: #{tpu_custom_call.1} parent=27 // pred_check_branch
          %159 = sbr.rel (%p157) target = $region36
        $region35: #{tpu_custom_call.1} parent=27 // pred_region
          %161 = dma.done [#allocation6], 1664
        $region36: #{tpu_custom_call.1} parent=27 // pred_fallthru
          _
        %s162 = sand.u32 %s28, 1
        %s163 = scalar_lea.sflag [#allocation3], %s162
        %s164 = sand.u32 %s28, 1
        %s165 = smul.addr %s164, 8
        %s166 = scalar_lea.vmem [#allocation2], %s165
        %p167 = pneg %p41
        %p168 = pneg %p38
        %p169 = pneg %p62
        %p170 = pneg %p59
        %p171 = pneg %p88
        %p172 = pneg %p85
        %s173 = sand.u32 %s75, 1
        %s174 = scalar_lea.sflag [#allocation4], %s173
        %s175 = sand.u32 %s75, 1
        %s176 = smul.addr %s175, 8
        %s177 = scalar_lea.vmem [#allocation7], %s176
        %v178 = vld [vmem:[%s151] sm:$0xff]
        %v179 = vld [vmem:[#allocation5] sm:$0xff]
        %v180 = vld [vmem:[#allocation5 + $0x8] sm:$0xff]
        %v181 = vld [vmem:[#allocation5 + $0x10] sm:$0xff]
        %v182 = vld [vmem:[#allocation5 + $0x18] sm:$0xff]
        %184 = vset.pattern.permute.xlu0 8
        %185 = vperm.xlu0 %184, %v179
        %v186 = vpop.permute.xlu0 %185
        %189 = vset.pattern.permute.xlu0 8
        %190 = vperm.xlu0 %189, %v180
        %v191 = vpop.permute.xlu0 %190
        %194 = vset.pattern.permute.xlu0 8
        %195 = vperm.xlu0 %194, %v181
        %v196 = vpop.permute.xlu0 %195
        %199 = vset.pattern.permute.xlu0 8
        %200 = vperm.xlu0 %199, %v182
        %v201 = vpop.permute.xlu0 %200
        %vm203 = vcmask 64512
        %v204 = vsel %vm203, %v179, 0
        %v206 = vsel %vm203, %v180, 0
        %v208 = vsel %vm203, %v181, 0
        %v210 = vsel %vm203, %v182, 0
        %212 = vmatpush.msra.mxu0 0.0
        %213 = vmatpush.msra.mxu0 0.0
        %214 = vmatpush.msra.mxu0 0.0
        %215 = vmatpush.msra.mxu0 0.0
        %216 = vmatpush.msra.mxu0 0.0
        %217 = vmatpush.msra.mxu0 0.0
        %218 = vmatpush.msra.mxu0 0.0
        %219 = vmatpush.msra.mxu0 0.0
        %220 = vmatpush.msra.mxu0 0.0
        %221 = vmatpush.msra.mxu0 0.0
        %222 = vmatpush.msra.mxu0 0.0
        %223 = vmatpush.msra.mxu0 0.0
        %224 = vmatpush.msra.mxu0 0.0
        %225 = vmatpush.msra.mxu0 0.0
        %226 = vmatpush.msra.mxu0 0.0
        %227 = vmatpush.msra.mxu0 %v178
        %228 = vmatmul.f32.gmra.mxu0 %v204
        %v229 = vpop.f32.mrf.mxu0
        %v230 = vadd.f32 %v186, %v229
        %231 = vmatmul.f32.gmra.mxu0 %v206
        %v232 = vpop.f32.mrf.mxu0
        %v233 = vadd.f32 %v191, %v232
        %234 = vmatmul.f32.gmra.mxu0 %v208
        %v235 = vpop.f32.mrf.mxu0
        %v236 = vadd.f32 %v196, %v235
        %237 = vmatmul.f32.gmra.mxu0 %v210
        %v238 = vpop.f32.mrf.mxu0
        %v239 = vadd.f32 %v201, %v238
        %240 = vdwg.mxu0
        %v241 = vmax.f32 %v230, 0.0
        %v242 = vmax.f32 %v233, 0.0
        %v243 = vmax.f32 %v236, 0.0
        %v244 = vmax.f32 %v239, 0.0
        %v245 = vld [vmem:[#allocation5 + $0x20] sm:$0xff]
        %v246 = vld [vmem:[#allocation5 + $0x28] sm:$0xff]
        %v247 = vld [vmem:[#allocation5 + $0x30] sm:$0xff]
        %v248 = vld [vmem:[#allocation5 + $0x38] sm:$0xff]
        %250 = vset.pattern.permute.xlu0 32
        %251 = vperm.xlu0 %250, %v245
        %v252 = vpop.permute.xlu0 %251
        %255 = vset.pattern.permute.xlu0 32
        %256 = vperm.xlu0 %255, %v246
        %v257 = vpop.permute.xlu0 %256
        %260 = vset.pattern.permute.xlu0 32
        %261 = vperm.xlu0 %260, %v247
        %v262 = vpop.permute.xlu0 %261
        %265 = vset.pattern.permute.xlu0 32
        %266 = vperm.xlu0 %265, %v248
        %v267 = vpop.permute.xlu0 %266
        %vm269 = vcmask 261120
        %v270 = vsel %vm269, %v245, 0
        %v272 = vsel %vm269, %v246, 0
        %v274 = vsel %vm269, %v247, 0
        %v276 = vsel %vm269, %v248, 0
        %278 = vmatpush.msra.mxu0 0.0
        %279 = vmatpush.msra.mxu0 0.0
        %280 = vmatpush.msra.mxu0 0.0
        %281 = vmatpush.msra.mxu0 0.0
        %282 = vmatpush.msra.mxu0 0.0
        %283 = vmatpush.msra.mxu0 0.0
        %284 = vmatpush.msra.mxu0 0.0
        %285 = vmatpush.msra.mxu0 0.0
        %286 = vmatpush.msra.mxu0 0.0
        %287 = vmatpush.msra.mxu0 0.0
        %288 = vmatpush.msra.mxu0 0.0
        %289 = vmatpush.msra.mxu0 0.0
        %290 = vmatpush.msra.mxu0 %v244
        %291 = vmatpush.msra.mxu0 %v243
        %292 = vmatpush.msra.mxu0 %v242
        %293 = vmatpush.msra.mxu0 %v241
        %294 = vmatmul.f32.gmra.mxu0 %v270
        %v295 = vpop.f32.mrf.mxu0
        %v296 = vadd.f32 %v252, %v295
        %297 = vmatmul.f32.gmra.mxu0 %v272
        %v298 = vpop.f32.mrf.mxu0
        %v299 = vadd.f32 %v257, %v298
        %300 = vmatmul.f32.gmra.mxu0 %v274
        %v301 = vpop.f32.mrf.mxu0
        %v302 = vadd.f32 %v262, %v301
        %303 = vmatmul.f32.gmra.mxu0 %v276
        %v304 = vpop.f32.mrf.mxu0
        %v305 = vadd.f32 %v267, %v304
        %306 = vdwg.mxu0
        %v307 = vmax.f32 %v296, 0.0
        %v308 = vmax.f32 %v299, 0.0
        %v309 = vmax.f32 %v302, 0.0
        %v310 = vmax.f32 %v305, 0.0
        %v311 = vld [vmem:[#allocation5 + $0x40] sm:$0xff]
        %v312 = vld [vmem:[#allocation5 + $0x48] sm:$0xff]
        %v313 = vld [vmem:[#allocation5 + $0x50] sm:$0xff]
        %v314 = vld [vmem:[#allocation5 + $0x58] sm:$0xff]
        %316 = vset.pattern.permute.xlu0 32
        %317 = vperm.xlu0 %316, %v311
        %v318 = vpop.permute.xlu0 %317
        %321 = vset.pattern.permute.xlu0 32
        %322 = vperm.xlu0 %321, %v312
        %v323 = vpop.permute.xlu0 %322
        %326 = vset.pattern.permute.xlu0 32
        %327 = vperm.xlu0 %326, %v313
        %v328 = vpop.permute.xlu0 %327
        %331 = vset.pattern.permute.xlu0 32
        %332 = vperm.xlu0 %331, %v314
        %v333 = vpop.permute.xlu0 %332
        %v335 = vsel %vm269, %v311, 0
        %v337 = vsel %vm269, %v312, 0
        %v339 = vsel %vm269, %v313, 0
        %v341 = vsel %vm269, %v314, 0
        %343 = vmatpush.msra.mxu0 0.0
        %344 = vmatpush.msra.mxu0 0.0
        %345 = vmatpush.msra.mxu0 0.0
        %346 = vmatpush.msra.mxu0 0.0
        %347 = vmatpush.msra.mxu0 0.0
        %348 = vmatpush.msra.mxu0 0.0
        %349 = vmatpush.msra.mxu0 0.0
        %350 = vmatpush.msra.mxu0 0.0
        %351 = vmatpush.msra.mxu0 0.0
        %352 = vmatpush.msra.mxu0 0.0
        %353 = vmatpush.msra.mxu0 0.0
        %354 = vmatpush.msra.mxu0 0.0
        %355 = vmatpush.msra.mxu0 %v310
        %356 = vmatpush.msra.mxu0 %v309
        %357 = vmatpush.msra.mxu0 %v308
        %358 = vmatpush.msra.mxu0 %v307
        %359 = vmatmul.f32.gmra.mxu0 %v335
        %v360 = vpop.f32.mrf.mxu0
        %v361 = vadd.f32 %v318, %v360
        %362 = vmatmul.f32.gmra.mxu0 %v337
        %v363 = vpop.f32.mrf.mxu0
        %v364 = vadd.f32 %v323, %v363
        %365 = vmatmul.f32.gmra.mxu0 %v339
        %v366 = vpop.f32.mrf.mxu0
        %v367 = vadd.f32 %v328, %v366
        %368 = vmatmul.f32.gmra.mxu0 %v341
        %v369 = vpop.f32.mrf.mxu0
        %v370 = vadd.f32 %v333, %v369
        %371 = vdwg.mxu0
        %v372 = vmax.f32 %v361, 0.0
        %v373 = vmax.f32 %v364, 0.0
        %v374 = vmax.f32 %v367, 0.0
        %v375 = vmax.f32 %v370, 0.0
        %v376 = vld [vmem:[#allocation5 + $0x60] sm:$0xff]
        %378 = vset.pattern.permute.xlu0 32
        %379 = vperm.xlu0 %378, %v376
        %v380 = vpop.permute.xlu0 %379
        %v382 = vsel %vm269, %v376, 0
        %384 = vmatpush.msra.mxu0 0.0
        %385 = vmatpush.msra.mxu0 0.0
        %386 = vmatpush.msra.mxu0 0.0
        %387 = vmatpush.msra.mxu0 0.0
        %388 = vmatpush.msra.mxu0 0.0
        %389 = vmatpush.msra.mxu0 0.0
        %390 = vmatpush.msra.mxu0 0.0
        %391 = vmatpush.msra.mxu0 0.0
        %392 = vmatpush.msra.mxu0 0.0
        %393 = vmatpush.msra.mxu0 0.0
        %394 = vmatpush.msra.mxu0 0.0
        %395 = vmatpush.msra.mxu0 0.0
        %396 = vmatpush.msra.mxu0 %v375
        %397 = vmatpush.msra.mxu0 %v374
        %398 = vmatpush.msra.mxu0 %v373
        %399 = vmatpush.msra.mxu0 %v372
        %400 = vmatmul.f32.gmra.mxu0 %v382
        %v401 = vpop.f32.mrf.mxu0
        %v402 = vadd.f32 %v380, %v401
        %403 = vdwg.mxu0
        %404 = vst [vmem:[%s177] sm:$0xff] %v402
        %s405 = sand.u32 %s75, 1
        %s406 = scalar_lea.sflag [#allocation4], %s405
        %s407 = sand.u32 %s75, 1
        %s408 = smul.addr %s407, 8
        %s409 = scalar_lea.vmem [#allocation7], %s408
        // Predicated region
        $region37: #{tpu_custom_call.1} parent=27 // pred_check
          %p410 = pneg %p85
        $region38: #{tpu_custom_call.1} parent=27 // pred_check_branch
          %412 = sbr.rel (%p410) target = $region40
        $region39: #{tpu_custom_call.1} parent=27 // pred_region
          %414 = vsyncadd %s406, 0
          %s415 = smul.addr %s20, 8
          %s416 = scalar_lea.hbm %s2, %s415
          %s418 = sshll.u32 %s409, 4
          %s419 = int_to_ptr.vmem [resolvable:$true] %s418
          %s420 = sshll.u32 %s416, 4
          %s421 = int_to_ptr.hbm [resolvable:$true] %s420
          %423 = dma.vmem_to_hbm [thread:$0]  %s419, 128, %s421, %s406
        $region40: #{tpu_custom_call.1} parent=27 // pred_fallthru
          _
      $region28: #{tpu_custom_call.1} parent=5 // pred_fallthru
        _
      %p424 = scmp.le.s32.totalorder 2, %s15
      // Predicated region
      $region41: #{tpu_custom_call.1} parent=5 // pred_check
        %p425 = pneg %p424
      $region42: #{tpu_custom_call.1} parent=5 // pred_check_branch
        %427 = sbr.rel (%p425) target = $region44
      $region43: #{tpu_custom_call.1} parent=5 // pred_region
        %s428 = ssub.s32 %s15, 2
        // Predicated region
        $region45: #{tpu_custom_call.1} parent=43 // pred_check
          %p429 = pneg %p91
        $region46: #{tpu_custom_call.1} parent=43 // pred_check_branch
          %431 = sbr.rel (%p429) target = $region48
        $region47: #{tpu_custom_call.1} parent=43 // pred_region
          %s432 = sand.u32 %s76, 1
          %s433 = scalar_lea.sflag [#allocation4], %s432
          %s434 = sand.u32 %s76, 1
          %s435 = smul.addr %s434, 8
          %s436 = scalar_lea.vmem [#allocation7], %s435
          %438 = dma.done %s433, 128
        $region48: #{tpu_custom_call.1} parent=43 // pred_fallthru
          _
      $region44: #{tpu_custom_call.1} parent=5 // pred_fallthru
        _
    $region6: #{tpu_custom_call.1} parent=1 // loop_footer
      %s19 = sadd.s32 1, %s15
    $region7: #{tpu_custom_call.1} parent=1 // loop_footer_branch
      %14 = sbr.rel target = $region3
    $region8: #{tpu_custom_call.1} parent=1 // loop_exit
      _
    %439 = vsyncpa [#allocation3], 1
    %s440 = scalar_lea.sflag [#allocation3], 1
    %441 = vsyncpa %s440, 1
    %442 = vsyncpa [#allocation6], 1
    %443 = vsyncpa [#allocation4], 1
    %s444 = scalar_lea.sflag [#allocation4], 1
    %445 = vsyncpa %s444, 1

</llo_original>
